<compile_context>
chip_gen: v5e
topology: v5e:2x2
jax: 0.10.0
libtpu: 0.0.40
codegen_flags: <defaults>
</compile_context>

<pallas_src>
import math

import jax
import jax.numpy as jnp
from jax.experimental import pallas as pl
from jax.experimental.pallas import tpu as pltpu


def _patch_proj_kernel(x_ref, w_ref, b_ref, o_ref):
    # x_ref: (TM, K) flattened patches, w_ref: (K, E), b_ref: (1, E)
    # o_ref: (TM, E) patch embeddings (lane-dense when E % 128 == 0).
    acc = jnp.dot(x_ref[...], w_ref[...], preferred_element_type=jnp.float32)
    acc = acc + b_ref[...].astype(jnp.float32)
    o_ref[...] = acc.astype(o_ref.dtype)


def _round_up(x, m):
    return -(-x // m) * m


def _pick_tile_m(K, E, itemsize, budget_bytes=24 * 1024 * 1024):
    """Largest row-tile that fits a conservative VMEM budget (v7x-safe)."""
    fixed = 2 * (K * E + E) * itemsize            # resident weight + bias (dbl-buffered)
    per_row = 2 * (K + E) * itemsize + E * 4      # dbl-buffered in/out rows + f32 acc
    avail = max(budget_bytes - fixed, per_row * 8)
    tm = min(1024, avail // per_row)
    return int(max(8, (tm // 8) * 8))


def _patch_linear(x2d, w2d, b2d):
    """(M, K) @ (K, E) + bias via a row-tiled, pipelined Pallas kernel."""
    M, K = x2d.shape
    E = w2d.shape[1]
    itemsize = jnp.dtype(x2d.dtype).itemsize

    TM = _pick_tile_m(K, E, itemsize)
    if M <= TM:
        TM = _round_up(max(M, 8), 8)
    M_pad = _round_up(M, TM)
    if M_pad != M:
        x2d = jnp.pad(x2d, ((0, M_pad - M), (0, 0)))

    cost = pl.CostEstimate(
        flops=2 * M_pad * K * E,
        transcendentals=0,
        bytes_accessed=(M_pad * K + K * E + E + M_pad * E) * itemsize,
    )

    out = pl.pallas_call(
        _patch_proj_kernel,
        out_shape=jax.ShapeDtypeStruct((M_pad, E), x2d.dtype),
        grid_spec=pltpu.PrefetchScalarGridSpec(
            num_scalar_prefetch=0,
            grid=(M_pad // TM,),
            in_specs=[
                pl.BlockSpec((TM, K), lambda i: (i, 0)),   # patch rows: tiled
                pl.BlockSpec((K, E), lambda i: (0, 0)),    # weight: resident
                pl.BlockSpec((1, E), lambda i: (0, 0)),    # bias: resident
            ],
            out_specs=pl.BlockSpec((TM, E), lambda i: (i, 0)),
        ),
        compiler_params=pltpu.CompilerParams(
            dimension_semantics=("parallel",),  # row tiles are independent (v7x: 2 TCs)
        ),
        cost_estimate=cost,
    )(x2d, w2d, b2d)

    if M_pad != M:
        out = out[:M]
    return out


def na_patch_embedding(token_dict, conv_w, conv_b, patch_size):
    """token_dict: {'q': (B,C,H,W), 'v': (B,C,H,W)} -> {'q','k','v'} of (B, Hp*Wp, E)."""
    q = token_dict["q"]
    v = token_dict["v"]
    B, C, H, W = q.shape
    P = patch_size
    Hp, Wp = H // P, W // P
    E = conv_w.shape[0]
    K = C * P * P

    def extract_patches(x):
        b = x.shape[0]
        x = x.reshape(b, C, Hp, P, Wp, P)
        x = x.transpose(0, 2, 4, 1, 3, 5)          # (b, Hp, Wp, C, P, P)
        return x.reshape(b * Hp * Wp, K)

    # Stack q- and v-patches: one kernel call, bigger M, better pipelining.
    x_all = jnp.concatenate([extract_patches(q), extract_patches(v)], axis=0)

    # Conv2d(kernel=P, stride=P) weight (E, C, P, P) == dense (K, E) matrix.
    w2d = conv_w.reshape(E, K).T
    b2d = conv_b.reshape(1, E)

    out_all = _patch_linear(x_all, w2d, b2d)

    n_q = B * Hp * Wp
    q_emb = out_all[:n_q].reshape(B, Hp * Wp, E)
    v_emb = out_all[n_q:].reshape(B, Hp * Wp, E)
    # PyTorch: k = v is an alias; return the same array (no duplicate store).
    return {"q": q_emb, "k": v_emb, "v": v_emb}


if __name__ == "__main__":
    # Small demo shapes consistent with the module's forward:
    #   images (B, C, H, W) = (2, 4, 16, 16), patch_size=4 -> 16 patches/image,
    #   emb_size=128 (multiple of 128 so the output stores are lane-dense).
    B, C, H, W = 2, 4, 16, 16
    P = 4
    E = 128

    key = jax.random.PRNGKey(0)
    kq, kv, kw, kb = jax.random.split(key, 4)
    token_dict = {
        "q": jax.random.normal(kq, (B, C, H, W), dtype=jnp.float32),
        "v": jax.random.normal(kv, (B, C, H, W), dtype=jnp.float32),
    }
    fan_in = C * P * P
    conv_w = jax.random.normal(kw, (E, C, P, P), dtype=jnp.float32) / math.sqrt(fan_in)
    conv_b = jax.random.normal(kb, (E,), dtype=jnp.float32) * 0.01

    out = na_patch_embedding(token_dict, conv_w, conv_b, P)
    jax.block_until_ready(out["q"])
    jax.block_until_ready(out["v"])

    # Independent reference: the strided conv itself.
    def ref_proj(x):
        y = jax.lax.conv_general_dilated(
            x, conv_w, window_strides=(P, P), padding="VALID",
            dimension_numbers=("NCHW", "OIHW", "NCHW"),
            precision=jax.lax.Precision.HIGHEST)
        y = y + conv_b[None, :, None, None]
        return y.transpose(0, 2, 3, 1).reshape(x.shape[0], (H // P) * (W // P), E)

    ref_q = ref_proj(token_dict["q"])
    ref_v = ref_proj(token_dict["v"])

    assert jnp.allclose(out["q"], ref_q, atol=1e-3, rtol=1e-3)
    assert jnp.allclose(out["v"], ref_v, atol=1e-3, rtol=1e-3)
    assert out["k"] is out["v"]  # k aliases v, matching PyTorch's `k = v`

    print("KERNEL_OK")
</pallas_src>

<mosaic_0001>
module attributes {stable_mosaic.version = 11 : i64} {
  func.func @_patch_proj_kernel(%arg0: i32, %arg1: memref<64x64xf32, #tpu.memory_space<vmem>>, %arg2: memref<64x128xf32, #tpu.memory_space<vmem>>, %arg3: memref<1x128xf32, #tpu.memory_space<vmem>>, %arg4: memref<64x128xf32, #tpu.memory_space<vmem>>) attributes {dimension_semantics = [#tpu.dimension_semantics<parallel>], iteration_bounds = array<i64: 1>, scalar_prefetch = 0 : i64, scratch_operands = 0 : i64, tpu.core_type = #tpu.core_type<tc>, window_params = [{transform_indices = @transform_0, window_bounds = array<i64: 64, 64>}, {pipeline_mode = #tpu.pipeline_mode<synchronous>, transform_indices = @transform_1, window_bounds = array<i64: 64, 128>}, {pipeline_mode = #tpu.pipeline_mode<synchronous>, transform_indices = @transform_2, window_bounds = array<i64: 1, 128>}, {transform_indices = @transform_3, window_bounds = array<i64: 64, 128>}]} {
    %c0 = arith.constant 0 : index
    %c0_0 = arith.constant 0 : index
    %0 = vector.load %arg1[%c0, %c0_0] : memref<64x64xf32, #tpu.memory_space<vmem>>, vector<64x64xf32>
    %c0_1 = arith.constant 0 : index
    %c0_2 = arith.constant 0 : index
    %1 = vector.load %arg2[%c0_1, %c0_2] : memref<64x128xf32, #tpu.memory_space<vmem>>, vector<64x128xf32>
    %cst = arith.constant dense<0.000000e+00> : vector<64x128xf32>
    %2 = tpu.matmul %0, %1, %cst {dimension_numbers = #tpu.dot_dimension_numbers<[1], [0], [0], [1], [0, 0, 1, 1], [], []>} : vector<64x64xf32>, vector<64x128xf32>, vector<64x128xf32> -> vector<64x128xf32>
    %c0_3 = arith.constant 0 : index
    %c0_4 = arith.constant 0 : index
    %3 = vector.load %arg3[%c0_3, %c0_4] : memref<1x128xf32, #tpu.memory_space<vmem>>, vector<1x128xf32>
    %4 = vector.broadcast %3 : vector<1x128xf32> to vector<64x128xf32>
    %5 = arith.addf %2, %4 : vector<64x128xf32>
    %c0_5 = arith.constant 0 : index
    %c0_6 = arith.constant 0 : index
    %6 = vector.load %arg4[%c0_5, %c0_6] : memref<64x128xf32, #tpu.memory_space<vmem>>, vector<64x128xf32>
    tpu.vector_store %arg4[%c0_5, %c0_6], %5 {strides = array<i32>} : memref<64x128xf32, #tpu.memory_space<vmem>>, vector<64x128xf32>,
    return
  }
  func.func @transform_0(%arg0: i32) -> (i32, i32) {
    %c0_i32 = arith.constant 0 : i32
    %c0_i32_0 = arith.constant 0 : i32
    return %arg0, %c0_i32 : i32, i32
  }
  func.func @transform_1(%arg0: i32) -> (i32, i32) {
    %c0_i32 = arith.constant 0 : i32
    %c0_i32_0 = arith.constant 0 : i32
    %c0_i32_1 = arith.constant 0 : i32
    return %c0_i32, %c0_i32_0 : i32, i32
  }
  func.func @transform_2(%arg0: i32) -> (i32, i32) {
    %c0_i32 = arith.constant 0 : i32
    %c0_i32_0 = arith.constant 0 : i32
    %c0_i32_1 = arith.constant 0 : i32
    return %c0_i32, %c0_i32_0 : i32, i32
  }
  func.func @transform_3(%arg0: i32) -> (i32, i32) {
    %c0_i32 = arith.constant 0 : i32
    %c0_i32_0 = arith.constant 0 : i32
    return %arg0, %c0_i32 : i32, i32
  }
}

</mosaic_0001>

<llo_original>
// kernel: tpu_custom_call.1
$region0: #{tpu_custom_call.1}
  #allocation0 [shape = 'u32[]', space=smem, size = 0x4, offset = 0x4, fixed_abs, tag = 'smem constant byte address 0x4 - core index']
  #allocation1 [shape = 'u32[72,128]{1,0:T(1,128)}', space=vmem, size = 0x9000, scoped, tag = 'internal scratch']
  %s0 = inlined_call_operand.hbm [shape: f32[64,64], index: 0, kind: input, shape index: {}]
  %s1 = inlined_call_operand.hbm [shape: f32[64,128], index: 1, kind: input, shape index: {}]
  %s2 = inlined_call_operand.vmem [shape: f32[1,128], index: 2, kind: input, shape index: {}]
  %s3 = inlined_call_operand.hbm [shape: f32[64,128], index: 3, kind: output, shape index: {}]
  %s4 = sld [smem:[#allocation0]]
  $region30: #{tpu_custom_call.1} parent=0
    _
  %s6 = ssub.s32 1, %s4
  %s7 = scalar_select 0, %s6, %s4
  $region1: #{tpu_custom_call.1} parent=0
    #allocation2 [shape = 'u8[32768]{0}', space=vmem, size = 0x8000, scoped, tag = 'input window, operand 0, single buffered']
    #allocation3 [shape = 's32[1]{0}', space=sflag, size = 0x4, scoped, tag = 'scoped memory for tpu_custom_call.1']
    #allocation4 [shape = 's32[1]{0}', space=sflag, size = 0x4, scoped, tag = 'scoped memory for tpu_custom_call.1']
    #allocation5 [shape = 'u8[32768]{0}', space=vmem, size = 0x8000, scoped, tag = 'input window, operand 1, single buffered']
    #allocation6 [shape = 's32[1]{0}', space=sflag, size = 0x4, scoped, tag = 'scoped memory for tpu_custom_call.1']
    #allocation7 [shape = 'u8[32768]{0}', space=vmem, size = 0x8000, scoped, tag = 'output window, operand 0, single buffered']
    %8 = vsyncpa [#allocation3], 0
    %9 = vsyncpa [#allocation6], 0
    %10 = vsyncpa [#allocation4], 0
    // Predicated region
    $region2: #{tpu_custom_call.1} parent=1 // pred_check
      _
    $region3: #{tpu_custom_call.1} parent=1 // pred_check_branch
      %12 = sbr.rel (0) target = $region5
    $region4: #{tpu_custom_call.1} parent=1 // pred_region
      %14 = vsyncadd [#allocation3], 0
      %s15 = sshll.u32 %s0, 4
      %s16 = int_to_ptr.hbm [resolvable:$true] %s15
      %s17 = sshll.u32 [#allocation2], 4
      %s18 = int_to_ptr.vmem [resolvable:$true] %s17
      %23 = dma.hbm_to_vmem [thread:$0]  %s16, 1024, %s18, [#allocation3], 128, 128, 8
    $region5: #{tpu_custom_call.1} parent=1 // pred_fallthru
      _
    // Predicated region
    $region6: #{tpu_custom_call.1} parent=1 // pred_check
      _
    $region7: #{tpu_custom_call.1} parent=1 // pred_check_branch
      %25 = sbr.rel (0) target = $region9
    $region8: #{tpu_custom_call.1} parent=1 // pred_region
      %27 = vsyncadd [#allocation6], 0
      %s28 = sshll.u32 %s1, 4
      %s29 = int_to_ptr.hbm [resolvable:$true] %s28
      %s30 = sshll.u32 [#allocation5], 4
      %s31 = int_to_ptr.vmem [resolvable:$true] %s30
      %36 = dma.hbm_to_vmem [thread:$0]  %s29, 1024, %s31, [#allocation6], 128, 128, 8
    $region9: #{tpu_custom_call.1} parent=1 // pred_fallthru
      _
    // Predicated region
    $region10: #{tpu_custom_call.1} parent=1 // pred_check
      _
    $region11: #{tpu_custom_call.1} parent=1 // pred_check_branch
      %38 = sbr.rel (0) target = $region13
    $region12: #{tpu_custom_call.1} parent=1 // pred_region
      _
    $region13: #{tpu_custom_call.1} parent=1 // pred_fallthru
      _
    // Predicated region
    $region14: #{tpu_custom_call.1} parent=1 // pred_check
      _
    $region15: #{tpu_custom_call.1} parent=1 // pred_check_branch
      %40 = sbr.rel (0) target = $region17
    $region16: #{tpu_custom_call.1} parent=1 // pred_region
      %42 = dma.done [#allocation3], 1024
    $region17: #{tpu_custom_call.1} parent=1 // pred_fallthru
      _
    // Predicated region
    $region18: #{tpu_custom_call.1} parent=1 // pred_check
      _
    $region19: #{tpu_custom_call.1} parent=1 // pred_check_branch
      %44 = sbr.rel (0) target = $region21
    $region20: #{tpu_custom_call.1} parent=1 // pred_region
      %46 = dma.done [#allocation6], 1024
    $region21: #{tpu_custom_call.1} parent=1 // pred_fallthru
      _
    %v47 = vld [vmem:[#allocation2] sm:$0xff]
    %v48 = vld [vmem:[#allocation2 + $0x8] sm:$0xff]
    %v49 = vld [vmem:[#allocation2 + $0x10] sm:$0xff]
    %v50 = vld [vmem:[#allocation2 + $0x18] sm:$0xff]
    %v51 = vld [vmem:[#allocation2 + $0x20] sm:$0xff]
    %v52 = vld [vmem:[#allocation2 + $0x28] sm:$0xff]
    %v53 = vld [vmem:[#allocation2 + $0x30] sm:$0xff]
    %v54 = vld [vmem:[#allocation2 + $0x38] sm:$0xff]
    %v55 = vld [vmem:[#allocation5] sm:$0xff]
    %v56 = vld [vmem:[#allocation5 + $0x8] sm:$0xff]
    %v57 = vld [vmem:[#allocation5 + $0x10] sm:$0xff]
    %v58 = vld [vmem:[#allocation5 + $0x18] sm:$0xff]
    %v59 = vld [vmem:[#allocation5 + $0x20] sm:$0xff]
    %v60 = vld [vmem:[#allocation5 + $0x28] sm:$0xff]
    %v61 = vld [vmem:[#allocation5 + $0x30] sm:$0xff]
    %v62 = vld [vmem:[#allocation5 + $0x38] sm:$0xff]
    %v63 = vld [vmem:[%s2] sm:$0x1]
    %v65 = vperm.slane %v63, 0
    %vm67 = vcmask 523264
    %v69 = vsel %vm67, %v47, 0
    %v72 = vsel %vm67, %v48, 0
    %v75 = vsel %vm67, %v49, 0
    %v78 = vsel %vm67, %v50, 0
    %v81 = vsel %vm67, %v51, 0
    %v84 = vsel %vm67, %v52, 0
    %v87 = vsel %vm67, %v53, 0
    %v90 = vsel %vm67, %v54, 0
    %92 = vmatpush.msra.mxu0 0.0
    %93 = vmatpush.msra.mxu0 0.0
    %94 = vmatpush.msra.mxu0 0.0
    %95 = vmatpush.msra.mxu0 0.0
    %96 = vmatpush.msra.mxu0 0.0
    %97 = vmatpush.msra.mxu0 0.0
    %98 = vmatpush.msra.mxu0 0.0
    %99 = vmatpush.msra.mxu0 0.0
    %100 = vmatpush.msra.mxu0 %v62
    %101 = vmatpush.msra.mxu0 %v61
    %102 = vmatpush.msra.mxu0 %v60
    %103 = vmatpush.msra.mxu0 %v59
    %104 = vmatpush.msra.mxu0 %v58
    %105 = vmatpush.msra.mxu0 %v57
    %106 = vmatpush.msra.mxu0 %v56
    %107 = vmatpush.msra.mxu0 %v55
    %108 = vmatmul.f32.gmra.mxu0 %v69
    %v109 = vpop.f32.mrf.mxu0
    %v110 = vadd.f32 %v65, %v109
    %111 = vmatmul.f32.gmra.mxu0 %v72
    %v112 = vpop.f32.mrf.mxu0
    %v113 = vadd.f32 %v65, %v112
    %114 = vmatmul.f32.gmra.mxu0 %v75
    %v115 = vpop.f32.mrf.mxu0
    %v116 = vadd.f32 %v65, %v115
    %117 = vmatmul.f32.gmra.mxu0 %v78
    %v118 = vpop.f32.mrf.mxu0
    %v119 = vadd.f32 %v65, %v118
    %120 = vmatmul.f32.gmra.mxu0 %v81
    %v121 = vpop.f32.mrf.mxu0
    %v122 = vadd.f32 %v65, %v121
    %123 = vmatmul.f32.gmra.mxu0 %v84
    %v124 = vpop.f32.mrf.mxu0
    %v125 = vadd.f32 %v65, %v124
    %126 = vmatmul.f32.gmra.mxu0 %v87
    %v127 = vpop.f32.mrf.mxu0
    %v128 = vadd.f32 %v65, %v127
    %129 = vmatmul.f32.gmra.mxu0 %v90
    %v130 = vpop.f32.mrf.mxu0
    %v131 = vadd.f32 %v65, %v130
    %132 = vdwg.mxu0
    %133 = vst [vmem:[#allocation7] sm:$0xff] %v110
    %134 = vst [vmem:[#allocation7 + $0x8] sm:$0xff] %v113
    %135 = vst [vmem:[#allocation7 + $0x10] sm:$0xff] %v116
    %136 = vst [vmem:[#allocation7 + $0x18] sm:$0xff] %v119
    %137 = vst [vmem:[#allocation7 + $0x20] sm:$0xff] %v122
    %138 = vst [vmem:[#allocation7 + $0x28] sm:$0xff] %v125
    %139 = vst [vmem:[#allocation7 + $0x30] sm:$0xff] %v128
    %140 = vst [vmem:[#allocation7 + $0x38] sm:$0xff] %v131
    // Predicated region
    $region22: #{tpu_custom_call.1} parent=1 // pred_check
      _
    $region23: #{tpu_custom_call.1} parent=1 // pred_check_branch
      %142 = sbr.rel (0) target = $region25
    $region24: #{tpu_custom_call.1} parent=1 // pred_region
      %144 = vsyncadd [#allocation4], 0
      %s145 = sshll.u32 [#allocation7], 4
      %s146 = int_to_ptr.vmem [resolvable:$true] %s145
      %s147 = sshll.u32 %s3, 4
      %s148 = int_to_ptr.hbm [resolvable:$true] %s147
      %153 = dma.vmem_to_hbm [thread:$0]  %s146, 1024, %s148, [#allocation4], 128, 128, 8
    $region25: #{tpu_custom_call.1} parent=1 // pred_fallthru
      _
    // Predicated region
    $region26: #{tpu_custom_call.1} parent=1 // pred_check
      _
    $region27: #{tpu_custom_call.1} parent=1 // pred_check_branch
      %155 = sbr.rel (0) target = $region29
    $region28: #{tpu_custom_call.1} parent=1 // pred_region
      %157 = dma.done [#allocation4], 1024
    $region29: #{tpu_custom_call.1} parent=1 // pred_fallthru
      _
    %158 = vsyncpa [#allocation3], 1
    %159 = vsyncpa [#allocation6], 1
    %160 = vsyncpa [#allocation4], 1

</llo_original>
